<compile_context>
chip_gen: v6e
topology: v6e:2x2x1
jax: 0.10.0
libtpu: 0.0.40
codegen_flags: <defaults>
</compile_context>

<pallas_src>
import functools

import jax
import jax.numpy as jnp
import numpy as np
from jax import lax
from jax.experimental import pallas as pl
from jax.experimental.pallas import tpu as pltpu

_CHUNK = 128      # points processed per inner step (lane width)
_FEAT_PAD = 8     # xyz features padded 3 -> 8 (sublane-aligned MXU contraction)


def _pointnet_kernel(x_ref, w1_ref, b1_ref, w2_ref, b2_ref, w3_ref, o_ref,
                     *, num_chunks, unroll):
    # x_ref:  (8, tile_n)   f32   feature-major point tile (rows 3..7 are zero)
    # w1_ref: (64, 8)       f32
    # b1_ref: (64, 128)     f32   bias pre-broadcast to chunk width
    # w2_ref: (128, 64)     bf16  (MXU operand)
    # b2_ref: (128, 128)    f32
    # w3_ref: (OUT, 128)    bf16  (MXU operand)
    # o_ref:  (OUT, 128)    f32   per-lane running max, resident across the
    #                             point-tile (reduction) grid axis.
    @pl.when(pl.program_id(2) == 0)
    def _():
        o_ref[...] = jnp.full(o_ref.shape, -jnp.inf, jnp.float32)

    w1 = w1_ref[...]
    b1 = b1_ref[...]
    w2 = w2_ref[...]
    b2 = b2_ref[...]
    w3 = w3_ref[...]

    def body(c, carry):
        start = pl.multiple_of(c * _CHUNK, _CHUNK)
        xc = x_ref[:, pl.ds(start, _CHUNK)]                     # (8, 128) f32

        # Layer 1 on the MXU (tiny K=8 contraction), bias + ReLU on the VPU.
        h1 = jnp.dot(w1, xc, preferred_element_type=jnp.float32) + b1
        h1 = jnp.maximum(h1, 0.0)                               # (64, 128)

        # Layers 2 & 3: bf16 MXU operands, f32 accumulation.
        h2 = jnp.dot(w2, h1.astype(jnp.bfloat16),
                     preferred_element_type=jnp.float32) + b2
        h2 = jnp.maximum(h2, 0.0)                               # (128, 128)

        # Layer-3 bias deferred to the wrapper: max(h3 + b3) == max(h3) + b3.
        h3 = jnp.dot(w3, h2.astype(jnp.bfloat16),
                     preferred_element_type=jnp.float32)        # (OUT, 128)

        return jnp.maximum(carry, h3)

    # Accumulate directly into the output block (seeded from it).
    o_ref[...] = lax.fori_loop(0, num_chunks, body, o_ref[...], unroll=unroll)


def _round_up(x, m):
    return ((x + m - 1) // m) * m


def pointnet_forward(x, params, *, tile_n=4096, point_shards=1):
    """x: (B, N, 3) float32 -> (B, output_dim) float32.

    tile_n:       points per grid step (rounded to a multiple of 128).
    point_shards: extra 'parallel' grid axis over points; set to the number of
                  TensorCores per chip (e.g. 2 on v7x) when B alone cannot keep
                  every core busy.
    """
    B, N, D = x.shape
    assert D == 3, f"Expected shape [B, N, 3], got {x.shape}"

    w1, b1, w2, b2, w3, b3 = params
    out_dim = w3.shape[1]
    S = max(1, int(point_shards))

    # Tile sizing: large tiles amortize per-step pipeline overhead; with the
    # feature-major layout an (8, 4096) f32 x tile is only 128 KiB of VMEM.
    n_per_shard = -(-N // S)
    tile_n = max(_CHUNK, min(tile_n, _round_up(n_per_shard, _CHUNK)))
    tile_n = _round_up(tile_n, _CHUNK)
    n_pad = _round_up(N, tile_n * S)
    tiles_per_shard = n_pad // (tile_n * S)
    num_chunks = tile_n // _CHUNK

    # Feature-major, lane-dense x: (B, 8, n_pad).  Padded points replicate the
    # last real point (never change the max); padded feature rows are zero
    # (contribute nothing to layer 1) -> no in-kernel masking needed.
    xT = jnp.swapaxes(x.astype(jnp.float32), 1, 2)              # (B, 3, N)
    if n_pad != N:
        xT = jnp.pad(xT, ((0, 0), (0, 0), (0, n_pad - N)), mode="edge")
    xT = jnp.pad(xT, ((0, 0), (0, _FEAT_PAD - 3), (0, 0)))      # (B, 8, n_pad)

    w1T = jnp.pad(w1.T.astype(jnp.float32),
                  ((0, 0), (0, _FEAT_PAD - 3)))                 # (64, 8) f32
    w2T = w2.T.astype(jnp.bfloat16)                             # (128, 64)
    w3T = w3.T.astype(jnp.bfloat16)                             # (OUT, 128)
    b1b = jnp.broadcast_to(b1.reshape(-1).astype(jnp.float32)[:, None],
                           (64, _CHUNK))                        # (64, 128)
    b2b = jnp.broadcast_to(b2.reshape(-1).astype(jnp.float32)[:, None],
                           (128, _CHUNK))                       # (128, 128)
    b3f = b3.reshape(-1).astype(jnp.float32)                    # (OUT,)

    grid = (B, S, tiles_per_shard)
    kernel = functools.partial(_pointnet_kernel, num_chunks=num_chunks,
                               unroll=min(2, num_chunks))

    partial = pl.pallas_call(
        kernel,
        out_shape=jax.ShapeDtypeStruct((B * S, out_dim, _CHUNK), jnp.float32),
        grid_spec=pltpu.PrefetchScalarGridSpec(
            num_scalar_prefetch=0,
            grid=grid,
            in_specs=[
                # x: one (8, tile_n) lane-dense slab per (batch, shard, tile).
                pl.BlockSpec((None, _FEAT_PAD, tile_n),
                             lambda b, s, n: (b, 0, s * tiles_per_shard + n)),
                # weights / biases: full arrays, constant across the grid.
                pl.BlockSpec(w1T.shape, lambda b, s, n: (0, 0)),
                pl.BlockSpec(b1b.shape, lambda b, s, n: (0, 0)),
                pl.BlockSpec(w2T.shape, lambda b, s, n: (0, 0)),
                pl.BlockSpec(b2b.shape, lambda b, s, n: (0, 0)),
                pl.BlockSpec(w3T.shape, lambda b, s, n: (0, 0)),
            ],
            # Output block stays resident across the point-tile reduction axis.
            out_specs=pl.BlockSpec((None, out_dim, _CHUNK),
                                   lambda b, s, n: (b * S + s, 0, 0)),
        ),
        compiler_params=pltpu.CompilerParams(
            dimension_semantics=("parallel", "parallel", "arbitrary")),
    )(xT, w1T, b1b, w2T, b2b, w3T)

    # Final reduce over (shard, lane) partial maxes + deferred layer-3 bias.
    partial = partial.reshape(B, S, out_dim, _CHUNK)
    return jnp.max(partial, axis=(1, 3)) + b3f[None, :]


def init_params(key, input_dim=3, output_dim=128):
    """Deterministic synthetic parameters matching the PyTorch module shapes."""
    k1, k2, k3, k4, k5, k6 = jax.random.split(key, 6)
    # (in, out) layout so the reference does x @ W + b (== torch x @ W.T + b).
    w1 = jax.random.normal(k1, (input_dim, 64), jnp.float32) * 0.1
    b1 = jax.random.normal(k2, (64,), jnp.float32) * 0.1
    w2 = jax.random.normal(k3, (64, 128), jnp.float32) * 0.1
    b2 = jax.random.normal(k4, (128,), jnp.float32) * 0.1
    w3 = jax.random.normal(k5, (128, output_dim), jnp.float32) * 0.1
    b3 = jax.random.normal(k6, (output_dim,), jnp.float32) * 0.1
    return (w1, b1, w2, b2, w3, b3)


def pointnet_ref(x, params):
    """Plain-JAX (f32) reference for correctness checking."""
    w1, b1, w2, b2, w3, b3 = params
    h = jax.nn.relu(x @ w1 + b1)
    h = jax.nn.relu(h @ w2 + b2)
    h = h @ w3 + b3
    return jnp.max(h, axis=1)


if __name__ == "__main__":
    key = jax.random.PRNGKey(0)
    kp, kx, kx2 = jax.random.split(key, 3)

    B, N, input_dim, output_dim = 2, 16, 3, 128
    params = init_params(kp, input_dim=input_dim, output_dim=output_dim)

    # Small shape consistent with the module: [B, N, 3].
    x = jax.random.normal(kx, (B, N, input_dim), jnp.float32)
    out = jax.block_until_ready(pointnet_forward(x, params))
    ref = pointnet_ref(x, params)
    # bf16 MXU operands in layers 2/3 -> looser tolerance than pure f32.
    np.testing.assert_allclose(np.asarray(out), np.asarray(ref),
                               rtol=3e-2, atol=3e-2)

    # Ragged N + multiple tiles along the reduction axis (exercises the
    # resident-output accumulation and edge-replicated point padding).
    x2 = jax.random.normal(kx2, (B, 600, input_dim), jnp.float32)
    out2 = jax.block_until_ready(pointnet_forward(x2, params, tile_n=256))
    ref2 = pointnet_ref(x2, params)
    np.testing.assert_allclose(np.asarray(out2), np.asarray(ref2),
                               rtol=3e-2, atol=3e-2)

    # Point-shard axis (v7x small-batch path: feeds both TensorCores).
    out3 = jax.block_until_ready(pointnet_forward(x2, params, point_shards=2))
    np.testing.assert_allclose(np.asarray(out3), np.asarray(ref2),
                               rtol=3e-2, atol=3e-2)

    print("KERNEL_OK")
</pallas_src>

<mosaic_0001>
module attributes {stable_mosaic.version = 11 : i64} {
  func.func @_pointnet_kernel(%arg0: i32, %arg1: i32, %arg2: i32, %arg3: memref<1x8x128xf32, #tpu.memory_space<vmem>>, %arg4: memref<64x8xf32, #tpu.memory_space<vmem>>, %arg5: memref<64x128xf32, #tpu.memory_space<vmem>>, %arg6: memref<128x64xbf16, #tpu.memory_space<vmem>>, %arg7: memref<128x128xf32, #tpu.memory_space<vmem>>, %arg8: memref<128x128xbf16, #tpu.memory_space<vmem>>, %arg9: memref<1x128x128xf32, #tpu.memory_space<vmem>>) attributes {dimension_semantics = [#tpu.dimension_semantics<parallel>, #tpu.dimension_semantics<parallel>, #tpu.dimension_semantics<arbitrary>], iteration_bounds = array<i64: 2, 1, 1>, scalar_prefetch = 0 : i64, scratch_operands = 0 : i64, tpu.core_type = #tpu.core_type<tc>, window_params = [{transform_indices = @transform_0, window_bounds = array<i64: 1, 8, 128>}, {pipeline_mode = #tpu.pipeline_mode<synchronous>, transform_indices = @transform_1, window_bounds = array<i64: 64, 8>}, {pipeline_mode = #tpu.pipeline_mode<synchronous>, transform_indices = @transform_2, window_bounds = array<i64: 64, 128>}, {pipeline_mode = #tpu.pipeline_mode<synchronous>, transform_indices = @transform_3, window_bounds = array<i64: 128, 64>}, {pipeline_mode = #tpu.pipeline_mode<synchronous>, transform_indices = @transform_4, window_bounds = array<i64: 128, 128>}, {pipeline_mode = #tpu.pipeline_mode<synchronous>, transform_indices = @transform_5, window_bounds = array<i64: 128, 128>}, {transform_indices = @transform_6, window_bounds = array<i64: 1, 128, 128>}]} {
    %c0_i32 = arith.constant 0 : i32
    %0 = arith.cmpi eq, %arg2, %c0_i32 : i32
    %1 = arith.extui %0 : i1 to i32
    %c0_i32_0 = arith.constant 0 : i32
    %2 = arith.cmpi ne, %1, %c0_i32_0 : i32
    scf.if %2 {
      %cst_23 = arith.constant 0xFF800000 : f32
      %30 = vector.broadcast %cst_23 : f32 to vector<128x128xf32>
      %c0_24 = arith.constant 0 : index
      %c0_25 = arith.constant 0 : index
      %c0_26 = arith.constant 0 : index
      %31 = vector.load %arg9[%c0_24, %c0_25, %c0_26] : memref<1x128x128xf32, #tpu.memory_space<vmem>>, vector<1x128x128xf32>
      %32 = vector.shape_cast %31 : vector<1x128x128xf32> to vector<128x128xf32>
      %33 = vector.shape_cast %30 : vector<128x128xf32> to vector<1x128x128xf32>
      tpu.vector_store %arg9[%c0_24, %c0_25, %c0_26], %33 {strides = array<i32>} : memref<1x128x128xf32, #tpu.memory_space<vmem>>, vector<1x128x128xf32>,
    } else {
    }
    %c0 = arith.constant 0 : index
    %c0_1 = arith.constant 0 : index
    %3 = vector.load %arg4[%c0, %c0_1] : memref<64x8xf32, #tpu.memory_space<vmem>>, vector<64x8xf32>
    %c0_2 = arith.constant 0 : index
    %c0_3 = arith.constant 0 : index
    %4 = vector.load %arg5[%c0_2, %c0_3] : memref<64x128xf32, #tpu.memory_space<vmem>>, vector<64x128xf32>
    %c0_4 = arith.constant 0 : index
    %c0_5 = arith.constant 0 : index
    %5 = vector.load %arg6[%c0_4, %c0_5] : memref<128x64xbf16, #tpu.memory_space<vmem>>, vector<128x64xbf16>
    %c0_6 = arith.constant 0 : index
    %c0_7 = arith.constant 0 : index
    %6 = vector.load %arg7[%c0_6, %c0_7] : memref<128x128xf32, #tpu.memory_space<vmem>>, vector<128x128xf32>
    %c0_8 = arith.constant 0 : index
    %c0_9 = arith.constant 0 : index
    %7 = vector.load %arg8[%c0_8, %c0_9] : memref<128x128xbf16, #tpu.memory_space<vmem>>, vector<128x128xbf16>
    %c0_10 = arith.constant 0 : index
    %c0_11 = arith.constant 0 : index
    %c0_12 = arith.constant 0 : index
    %8 = vector.load %arg9[%c0_10, %c0_11, %c0_12] : memref<1x128x128xf32, #tpu.memory_space<vmem>>, vector<1x128x128xf32>
    %9 = vector.shape_cast %8 : vector<1x128x128xf32> to vector<128x128xf32>
    %c0_i32_13 = arith.constant 0 : i32
    %c128_i32 = arith.constant 128 : i32
    %10 = arith.muli %c0_i32_13, %c128_i32 : i32
    %11 = tpu.assume_multiple %10, 128 : i32
    %c0_14 = arith.constant 0 : index
    %c0_15 = arith.constant 0 : index
    %12 = arith.index_cast %11 : i32 to index
    %13 = vector.load %arg3[%c0_14, %c0_15, %12] : memref<1x8x128xf32, #tpu.memory_space<vmem>>, vector<1x8x128xf32>
    %14 = vector.shape_cast %13 : vector<1x8x128xf32> to vector<8x128xf32>
    %cst = arith.constant dense<0.000000e+00> : vector<64x128xf32>
    %15 = tpu.matmul %3, %14, %cst {dimension_numbers = #tpu.dot_dimension_numbers<[1], [0], [0], [1], [0, 0, 1, 1], [], []>} : vector<64x8xf32>, vector<8x128xf32>, vector<64x128xf32> -> vector<64x128xf32>
    %16 = arith.addf %15, %4 : vector<64x128xf32>
    %cst_16 = arith.constant 0.000000e+00 : f32
    %17 = vector.broadcast %cst_16 : f32 to vector<64x128xf32>
    %18 = arith.maximumf %16, %17 : vector<64x128xf32>
    %19 = arith.truncf %18 : vector<64x128xf32> to vector<64x128xbf16>
    %cst_17 = arith.constant dense<0.000000e+00> : vector<128x128xf32>
    %20 = tpu.matmul %5, %19, %cst_17 {dimension_numbers = #tpu.dot_dimension_numbers<[1], [0], [0], [1], [0, 0, 1, 1], [], []>} : vector<128x64xbf16>, vector<64x128xbf16>, vector<128x128xf32> -> vector<128x128xf32>
    %21 = arith.addf %20, %6 : vector<128x128xf32>
    %cst_18 = arith.constant 0.000000e+00 : f32
    %22 = vector.broadcast %cst_18 : f32 to vector<128x128xf32>
    %23 = arith.maximumf %21, %22 : vector<128x128xf32>
    %24 = arith.truncf %23 : vector<128x128xf32> to vector<128x128xbf16>
    %cst_19 = arith.constant dense<0.000000e+00> : vector<128x128xf32>
    %25 = tpu.matmul %7, %24, %cst_19 {dimension_numbers = #tpu.dot_dimension_numbers<[1], [0], [0], [1], [0, 0, 1, 1], [], []>} : vector<128x128xbf16>, vector<128x128xbf16>, vector<128x128xf32> -> vector<128x128xf32>
    %26 = arith.maximumf %9, %25 : vector<128x128xf32>
    %c1_i32 = arith.constant 1 : i32
    %c0_20 = arith.constant 0 : index
    %c0_21 = arith.constant 0 : index
    %c0_22 = arith.constant 0 : index
    %27 = vector.load %arg9[%c0_20, %c0_21, %c0_22] : memref<1x128x128xf32, #tpu.memory_space<vmem>>, vector<1x128x128xf32>
    %28 = vector.shape_cast %27 : vector<1x128x128xf32> to vector<128x128xf32>
    %29 = vector.shape_cast %26 : vector<128x128xf32> to vector<1x128x128xf32>
    tpu.vector_store %arg9[%c0_20, %c0_21, %c0_22], %29 {strides = array<i32>} : memref<1x128x128xf32, #tpu.memory_space<vmem>>, vector<1x128x128xf32>,
    return
  }
  func.func @transform_0(%arg0: i32, %arg1: i32, %arg2: i32) -> (i32, i32, i32) {
    %c1_i32 = arith.constant 1 : i32
    %0 = arith.muli %arg1, %c1_i32 : i32
    %1 = arith.addi %0, %arg2 : i32
    %c0_i32 = arith.constant 0 : i32
    %c0_i32_0 = arith.constant 0 : i32
    return %arg0, %c0_i32, %1 : i32, i32, i32
  }
  func.func @transform_1(%arg0: i32, %arg1: i32, %arg2: i32) -> (i32, i32) {
    %c0_i32 = arith.constant 0 : i32
    %c0_i32_0 = arith.constant 0 : i32
    %c0_i32_1 = arith.constant 0 : i32
    return %c0_i32, %c0_i32_0 : i32, i32
  }
  func.func @transform_2(%arg0: i32, %arg1: i32, %arg2: i32) -> (i32, i32) {
    %c0_i32 = arith.constant 0 : i32
    %c0_i32_0 = arith.constant 0 : i32
    %c0_i32_1 = arith.constant 0 : i32
    return %c0_i32, %c0_i32_0 : i32, i32
  }
  func.func @transform_3(%arg0: i32, %arg1: i32, %arg2: i32) -> (i32, i32) {
    %c0_i32 = arith.constant 0 : i32
    %c0_i32_0 = arith.constant 0 : i32
    %c0_i32_1 = arith.constant 0 : i32
    return %c0_i32, %c0_i32_0 : i32, i32
  }
  func.func @transform_4(%arg0: i32, %arg1: i32, %arg2: i32) -> (i32, i32) {
    %c0_i32 = arith.constant 0 : i32
    %c0_i32_0 = arith.constant 0 : i32
    %c0_i32_1 = arith.constant 0 : i32
    return %c0_i32, %c0_i32_0 : i32, i32
  }
  func.func @transform_5(%arg0: i32, %arg1: i32, %arg2: i32) -> (i32, i32) {
    %c0_i32 = arith.constant 0 : i32
    %c0_i32_0 = arith.constant 0 : i32
    %c0_i32_1 = arith.constant 0 : i32
    return %c0_i32, %c0_i32_0 : i32, i32
  }
  func.func @transform_6(%arg0: i32, %arg1: i32, %arg2: i32) -> (i32, i32, i32) {
    %c1_i32 = arith.constant 1 : i32
    %0 = arith.muli %arg0, %c1_i32 : i32
    %1 = arith.addi %0, %arg1 : i32
    %c0_i32 = arith.constant 0 : i32
    %c0_i32_0 = arith.constant 0 : i32
    %c0_i32_1 = arith.constant 0 : i32
    return %1, %c0_i32, %c0_i32_0 : i32, i32, i32
  }
}

</mosaic_0001>

<llo_original>
// kernel: tpu_custom_call.1
$region0: #{tpu_custom_call.1}
  #allocation0 [shape = 'u32[]', space=smem, size = 0x4, offset = 0x4, fixed_abs, tag = 'smem constant byte address 0x4 - core index']
  #allocation1 [shape = 'u32[144,128]{1,0:T(1,128)}', space=vmem, size = 0x12000, scoped, tag = 'internal scratch']
  %s0 = inlined_call_operand.vmem [shape: f32[2,8,128], index: 0, kind: input, shape index: {}]
  %s1 = inlined_call_operand.vmem [shape: f32[64,8], index: 1, kind: input, shape index: {}]
  %s2 = inlined_call_operand.hbm [shape: f32[64,128], index: 2, kind: input, shape index: {}]
  %s3 = inlined_call_operand.vmem [shape: bf16[128,64], index: 3, kind: input, shape index: {}]
  %s4 = inlined_call_operand.vmem [shape: f32[128,128], index: 4, kind: input, shape index: {}]
  %s5 = inlined_call_operand.hbm [shape: bf16[128,128], index: 5, kind: input, shape index: {}]
  %s6 = inlined_call_operand.hbm [shape: f32[2,128,128], index: 6, kind: output, shape index: {}]
  %s7 = sld [smem:[#allocation0]]
  $region69: #{tpu_custom_call.1} parent=0
    _
  %s9 = ssub.s32 1, %s7
  %s10 = scalar_select 0, %s9, %s7
  $region1: #{tpu_custom_call.1} parent=0
    #allocation2 [shape = 'u8[32768]{0}', space=vmem, size = 0x8000, scoped, tag = 'input window, operand 2, single buffered']
    #allocation3 [shape = 's32[2]{0}', space=sflag, size = 0x8, scoped, tag = 'scoped memory for tpu_custom_call.1']
    #allocation4 [shape = 's32[2]{0}', space=sflag, size = 0x8, scoped, tag = 'scoped memory for tpu_custom_call.1']
    #allocation5 [shape = 'u8[32768]{0}', space=vmem, size = 0x8000, scoped, tag = 'input window, operand 5, single buffered']
    #allocation6 [shape = 's32[1]{0}', space=sflag, size = 0x4, scoped, tag = 'scoped memory for tpu_custom_call.1']
    #allocation7 [shape = 'u8[131072]{0}', space=vmem, size = 0x20000, scoped, tag = 'output window, operand 0']
    %11 = vsyncpa [#allocation3], 0
    %12 = vsyncpa [#allocation6], 0
    %13 = vsyncpa [#allocation4], 0
    %s14 = scalar_lea.sflag [#allocation4], 1
    %15 = vsyncpa %s14, 0
    loop: start=0, step=1, limit=4
    $region2: #{tpu_custom_call.1} parent=1 // loop_pre_header
      _
    $region3: #{tpu_custom_call.1} parent=1 // loop_header
      %s17 = sphi 0, %s21
      %p18 = scmp.ge.s32.totalorder %s17, 4
      %s24 = sphi 0, %s43
      %s25 = sphi 0, %s39
      %s26 = sphi 0, %s35
      %s27 = sphi 0, %s24
      %s28 = sphi 0, %s25
      %s29 = sphi 0, %s26
      %s30 = sphi 0, %s27
      %s31 = sphi 0, %s28
      %s32 = sphi 0, %s29
      %s50 = sphi 0, %s52
      %s53 = sphi 0, %s50
      %s54 = sphi 0, %s53
      %s70 = sphi 0, %s54
      %s74 = sphi 0, %s74
      %s76 = sphi 0, %s74
      %s77 = sphi 0, %s76
      %s91 = sphi 0, %s77
      %s95 = sphi 0, %s95
      %s97 = sphi 0, %s95
      %s98 = sphi 0, %s97
      %s112 = sphi 0, %s98
      %s116 = sphi 0, %s116
      %s118 = sphi 0, %s116
      %s119 = sphi 0, %s118
      %s133 = sphi 0, %s119
      %s137 = sphi 0, %s137
      %s139 = sphi 0, %s137
      %s140 = sphi 0, %s139
      %s154 = sphi 0, %s140
      %s158 = sphi 0, %s158
      %s160 = sphi 0, %s158
      %s161 = sphi 0, %s160
      %s175 = sphi 0, %s161
      %s183 = sphi 0, %s185
      %s186 = sphi 0, %s183
      %s187 = sphi 0, %s186
      %s203 = sphi 0, %s187
    $region4: #{tpu_custom_call.1} parent=1 // loop_header_branch
      %20 = sbr.rel (%p18) target = $region8
    $region5: #{tpu_custom_call.1} parent=1 // loop_body
      %s22 = ssub.s32 %s17, 1
      %s23 = ssub.s32 %s17, 2
      %s33 = sadd.s32 1, %s26
      %p34 = scmp.ge.s32.totalorder %s33, 1
      %s35 = scalar_select %p34, 0, %s33
      %s36 = sadd.s32 1, %s25
      %s37 = scalar_select %p34, %s36, %s25
      %p38 = scmp.ge.s32.totalorder %s37, 1
      %s39 = scalar_select %p38, 0, %s37
      %s40 = sadd.s32 1, %s24
      %s41 = scalar_select %p38, %s40, %s24
      %p42 = scmp.ge.s32.totalorder %s41, 2
      %s43 = scalar_select %p42, 0, %s41
      %s44 = sadd.s32 %s25, %s26
      %s45 = sadd.s32 %s39, %s35
      %s46 = ssub.s32 %s24, %s43
      %s47 = ssub.s32 %s44, %s45
      %s48 = sor.u32 %s46, %s47
      %p49 = scmp.eq.s32.totalorder %s48, 0
      %s51 = sadd.s32 %s50, 1
      %s52 = scalar_select %p49, %s50, %s51
      %p55 = pneg %p49
      %p56 = scmp.eq.s32.totalorder %s17, 1
      %p57 = por %p55, %p56
      %p58 = scmp.ne.s32.totalorder %s50, %s53
      %p59 = scmp.eq.s32.totalorder %s17, 0
      %p60 = por %p58, %p59
      %p61 = scmp.ne.s32.totalorder %s50, %s53
      %p62 = scmp.eq.s32.totalorder %s22, 1
      %p63 = por %p61, %p62
      %p64 = scmp.ne.s32.totalorder %s53, %s54
      %p65 = scmp.eq.s32.totalorder %s22, 0
      %p66 = por %p64, %p65
      %p67 = scmp.ne.s32.totalorder %s53, %s54
      %p68 = scmp.eq.s32.totalorder %s23, 1
      %p69 = por %p67, %p68
      %p71 = scmp.ne.s32.totalorder %s54, %s70
      %p72 = scmp.eq.s32.totalorder %s23, 0
      %p73 = por %p71, %p72
      %s75 = sadd.s32 %s74, 1
      %p78 = scmp.eq.s32.totalorder %s17, 1
      %p79 = scmp.ne.s32.totalorder %s74, %s76
      %p80 = scmp.eq.s32.totalorder %s17, 0
      %p81 = por %p79, %p80
      %p82 = scmp.ne.s32.totalorder %s74, %s76
      %p83 = scmp.eq.s32.totalorder %s22, 1
      %p84 = por %p82, %p83
      %p85 = scmp.ne.s32.totalorder %s76, %s77
      %p86 = scmp.eq.s32.totalorder %s22, 0
      %p87 = por %p85, %p86
      %p88 = scmp.ne.s32.totalorder %s76, %s77
      %p89 = scmp.eq.s32.totalorder %s23, 1
      %p90 = por %p88, %p89
      %p92 = scmp.ne.s32.totalorder %s77, %s91
      %p93 = scmp.eq.s32.totalorder %s23, 0
      %p94 = por %p92, %p93
      %s96 = sadd.s32 %s95, 1
      %p99 = scmp.eq.s32.totalorder %s17, 1
      %p100 = scmp.ne.s32.totalorder %s95, %s97
      %p101 = scmp.eq.s32.totalorder %s17, 0
      %p102 = por %p100, %p101
      %p103 = scmp.ne.s32.totalorder %s95, %s97
      %p104 = scmp.eq.s32.totalorder %s22, 1
      %p105 = por %p103, %p104
      %p106 = scmp.ne.s32.totalorder %s97, %s98
      %p107 = scmp.eq.s32.totalorder %s22, 0
      %p108 = por %p106, %p107
      %p109 = scmp.ne.s32.totalorder %s97, %s98
      %p110 = scmp.eq.s32.totalorder %s23, 1
      %p111 = por %p109, %p110
      %p113 = scmp.ne.s32.totalorder %s98, %s112
      %p114 = scmp.eq.s32.totalorder %s23, 0
      %p115 = por %p113, %p114
      %s117 = sadd.s32 %s116, 1
      %p120 = scmp.eq.s32.totalorder %s17, 1
      %p121 = scmp.ne.s32.totalorder %s116, %s118
      %p122 = scmp.eq.s32.totalorder %s17, 0
      %p123 = por %p121, %p122
      %p124 = scmp.ne.s32.totalorder %s116, %s118
      %p125 = scmp.eq.s32.totalorder %s22, 1
      %p126 = por %p124, %p125
      %p127 = scmp.ne.s32.totalorder %s118, %s119
      %p128 = scmp.eq.s32.totalorder %s22, 0
      %p129 = por %p127, %p128
      %p130 = scmp.ne.s32.totalorder %s118, %s119
      %p131 = scmp.eq.s32.totalorder %s23, 1
      %p132 = por %p130, %p131
      %p134 = scmp.ne.s32.totalorder %s119, %s133
      %p135 = scmp.eq.s32.totalorder %s23, 0
      %p136 = por %p134, %p135
      %s138 = sadd.s32 %s137, 1
      %p141 = scmp.eq.s32.totalorder %s17, 1
      %p142 = scmp.ne.s32.totalorder %s137, %s139
      %p143 = scmp.eq.s32.totalorder %s17, 0
      %p144 = por %p142, %p143
      %p145 = scmp.ne.s32.totalorder %s137, %s139
      %p146 = scmp.eq.s32.totalorder %s22, 1
      %p147 = por %p145, %p146
      %p148 = scmp.ne.s32.totalorder %s139, %s140
      %p149 = scmp.eq.s32.totalorder %s22, 0
      %p150 = por %p148, %p149
      %p151 = scmp.ne.s32.totalorder %s139, %s140
      %p152 = scmp.eq.s32.totalorder %s23, 1
      %p153 = por %p151, %p152
      %p155 = scmp.ne.s32.totalorder %s140, %s154
      %p156 = scmp.eq.s32.totalorder %s23, 0
      %p157 = por %p155, %p156
      %s159 = sadd.s32 %s158, 1
      %p162 = scmp.eq.s32.totalorder %s17, 1
      %p163 = scmp.ne.s32.totalorder %s158, %s160
      %p164 = scmp.eq.s32.totalorder %s17, 0
      %p165 = por %p163, %p164
      %p166 = scmp.ne.s32.totalorder %s158, %s160
      %p167 = scmp.eq.s32.totalorder %s22, 1
      %p168 = por %p166, %p167
      %p169 = scmp.ne.s32.totalorder %s160, %s161
      %p170 = scmp.eq.s32.totalorder %s22, 0
      %p171 = por %p169, %p170
      %p172 = scmp.ne.s32.totalorder %s160, %s161
      %p173 = scmp.eq.s32.totalorder %s23, 1
      %p174 = por %p172, %p173
      %p176 = scmp.ne.s32.totalorder %s161, %s175
      %p177 = scmp.eq.s32.totalorder %s23, 0
      %p178 = por %p176, %p177
      %s179 = sadd.s32 %s24, %s25
      %s180 = sadd.s32 %s43, %s39
      %s181 = ssub.s32 %s179, %s180
      %p182 = scmp.eq.s32.totalorder %s181, 0
      %s184 = sadd.s32 %s183, 1
      %s185 = scalar_select %p182, %s183, %s184
      %p188 = pneg %p182
      %p189 = scmp.eq.s32.totalorder %s17, 1
      %p190 = por %p188, %p189
      %p191 = scmp.ne.s32.totalorder %s183, %s186
      %p192 = scmp.eq.s32.totalorder %s17, 0
      %p193 = por %p191, %p192
      %p194 = scmp.ne.s32.totalorder %s183, %s186
      %p195 = scmp.eq.s32.totalorder %s22, 1
      %p196 = por %p194, %p195
      %p197 = scmp.ne.s32.totalorder %s186, %s187
      %p198 = scmp.eq.s32.totalorder %s22, 0
      %p199 = por %p197, %p198
      %p200 = scmp.ne.s32.totalorder %s186, %s187
      %p201 = scmp.eq.s32.totalorder %s23, 1
      %p202 = por %p200, %p201
      %p204 = scmp.ne.s32.totalorder %s187, %s203
      %p205 = scmp.eq.s32.totalorder %s23, 0
      %p206 = por %p204, %p205
      %p207 = scmp.le.s32.totalorder 1, %s17
      %p208 = scmp.lt.s32.totalorder %s17, 3
      %p209 = pnand %p207, %p208
      %p210 = pneg %p209
      // Predicated region
      $region9: #{tpu_custom_call.1} parent=5 // pred_check
        _
      $region10: #{tpu_custom_call.1} parent=5 // pred_check_branch
        %212 = sbr.rel (%p209) target = $region12
      $region11: #{tpu_custom_call.1} parent=5 // pred_region
        %s213 = ssub.s32 %s17, 1
        // Predicated region
        $region13: #{tpu_custom_call.1} parent=11 // pred_check
          %p214 = pneg %p87
        $region14: #{tpu_custom_call.1} parent=11 // pred_check_branch
          %216 = sbr.rel (%p214) target = $region16
        $region15: #{tpu_custom_call.1} parent=11 // pred_region
          _
        $region16: #{tpu_custom_call.1} parent=11 // pred_fallthru
          _
        // Predicated region
        $region17: #{tpu_custom_call.1} parent=11 // pred_check
          %p217 = pneg %p108
        $region18: #{tpu_custom_call.1} parent=11 // pred_check_branch
          %219 = sbr.rel (%p217) target = $region20
        $region19: #{tpu_custom_call.1} parent=11 // pred_region
          %s221 = ssub.s32 1024, 1024
          %222 = vsyncadd [#allocation3], %s221
          %s223 = sshll.u32 [#allocation2], 4
          %s224 = int_to_ptr.vmem [resolvable:$true] %s223
          %229 = dma.hbm_to_vmem [thread:$0]  %s2, 1024, %s224, [#allocation3], 128, 128, 8
        $region20: #{tpu_custom_call.1} parent=11 // pred_fallthru
          _
        // Predicated region
        $region21: #{tpu_custom_call.1} parent=11 // pred_check
          %p230 = pneg %p129
        $region22: #{tpu_custom_call.1} parent=11 // pred_check_branch
          %232 = sbr.rel (%p230) target = $region24
        $region23: #{tpu_custom_call.1} parent=11 // pred_region
          _
        $region24: #{tpu_custom_call.1} parent=11 // pred_fallthru
          _
        // Predicated region
        $region25: #{tpu_custom_call.1} parent=11 // pred_check
          %p233 = pneg %p150
        $region26: #{tpu_custom_call.1} parent=11 // pred_check_branch
          %235 = sbr.rel (%p233) target = $region28
        $region27: #{tpu_custom_call.1} parent=11 // pred_region
          _
        $region28: #{tpu_custom_call.1} parent=11 // pred_fallthru
          _
        // Predicated region
        $region29: #{tpu_custom_call.1} parent=11 // pred_check
          %p236 = pneg %p171
        $region30: #{tpu_custom_call.1} parent=11 // pred_check_branch
          %238 = sbr.rel (%p236) target = $region32
        $region31: #{tpu_custom_call.1} parent=11 // pred_region
          %s240 = ssub.s32 1024, 1024
          %241 = vsyncadd [#allocation6], %s240
          %s242 = sshll.u32 [#allocation5], 4
          %s243 = int_to_ptr.vmem [resolvable:$true] %s242
          %248 = dma.hbm_to_vmem [thread:$0]  %s5, 1024, %s243, [#allocation6], 64, 64, 4
        $region32: #{tpu_custom_call.1} parent=11 // pred_fallthru
          _
      $region12: #{tpu_custom_call.1} parent=5 // pred_fallthru
        _
      %p249 = scmp.lt.s32.totalorder %s17, 2
      // Predicated region
      $region33: #{tpu_custom_call.1} parent=5 // pred_check
        %p250 = pneg %p249
      $region34: #{tpu_custom_call.1} parent=5 // pred_check_branch
        %252 = sbr.rel (%p250) target = $region36
      $region35: #{tpu_custom_call.1} parent=5 // pred_region
        // Predicated region
        $region37: #{tpu_custom_call.1} parent=35 // pred_check
          %p253 = pneg %p60
        $region38: #{tpu_custom_call.1} parent=35 // pred_check_branch
          %255 = sbr.rel (%p253) target = $region40
        $region39: #{tpu_custom_call.1} parent=35 // pred_region
          %s256 = sadd.s32 %s25, %s26
          %p257 = scmp.lt.s32.totalorder %s24, 1
          %s258 = scalar_select %p257, %s24, 1
          %p259 = scmp.lt.s32.totalorder %s256, 0
          %s260 = scalar_select %p259, %s256, 0
          %s261 = sadd.s32 %s260, %s258
          %s262 = smul.addr %s261, 8
          %s263 = scalar_lea.vmem %s0, %s262
          %s264 = sadd.s32 %s25, %s26
        $region40: #{tpu_custom_call.1} parent=35 // pred_fallthru
          _
      $region36: #{tpu_custom_call.1} parent=5 // pred_fallthru
        _
      %p265 = scmp.le.s32.totalorder 1, %s17
      %p266 = scmp.lt.s32.totalorder %s17, 3
      %p267 = pnand %p265, %p266
      %p268 = pneg %p267
      // Predicated region
      $region41: #{tpu_custom_call.1} parent=5 // pred_check
        _
      $region42: #{tpu_custom_call.1} parent=5 // pred_check_branch
        %270 = sbr.rel (%p267) target = $region44
      $region43: #{tpu_custom_call.1} parent=5 // pred_region
        %s271 = ssub.s32 %s17, 1
        // Predicated region
        $region45: #{tpu_custom_call.1} parent=43 // pred_check
          %p272 = pneg %p108
        $region46: #{tpu_custom_call.1} parent=43 // pred_check_branch
          %274 = sbr.rel (%p272) target = $region48
        $region47: #{tpu_custom_call.1} parent=43 // pred_region
          %275 = dma.done [#allocation3], 1024
        $region48: #{tpu_custom_call.1} parent=43 // pred_fallthru
          _
        // Predicated region
        $region49: #{tpu_custom_call.1} parent=43 // pred_check
          %p276 = pneg %p171
        $region50: #{tpu_custom_call.1} parent=43 // pred_check_branch
          %278 = sbr.rel (%p276) target = $region52
        $region51: #{tpu_custom_call.1} parent=43 // pred_region
          %279 = dma.done [#allocation6], 1024
        $region52: #{tpu_custom_call.1} parent=43 // pred_fallthru
          _
        %s280 = sadd.s32 %s28, %s29
        %p281 = scmp.lt.s32.totalorder %s27, 1
        %s282 = scalar_select %p281, %s27, 1
        %p283 = scmp.lt.s32.totalorder %s280, 0
        %s284 = scalar_select %p283, %s280, 0
        %s285 = sadd.s32 %s284, %s282
        %s286 = smul.addr %s285, 8
        %s287 = scalar_lea.vmem %s0, %s286
        %p288 = pneg %p66
        %p289 = pneg %p63
        %p290 = pneg %p87
        %p291 = pneg %p84
        %p292 = pneg %p108
        %p293 = pneg %p105
        %p294 = pneg %p129
        %p295 = pneg %p126
        %p296 = pneg %p150
        %p297 = pneg %p147
        %p298 = pneg %p171
        %p299 = pneg %p168
        %p300 = pneg %p199
        %p301 = pneg %p196
        %s302 = sand.u32 %s186, 1
        %s303 = scalar_lea.sflag [#allocation4], %s302
        %s304 = sand.u32 %s186, 1
        %s305 = smul.addr %s304, 128
        %s306 = scalar_lea.vmem [#allocation7], %s305
        %s307 = sadd.s32 %s28, %s29
        %p308 = scmp.lt.s32.totalorder %s27, 1
        %s309 = scalar_select %p308, %s27, 1
        %p310 = scmp.lt.s32.totalorder %s307, 0
        %s311 = scalar_select %p310, %s307, 0
        %s312 = sadd.s32 %s311, %s309
        %s313 = smul.addr %s312, 8
        %s314 = scalar_lea.vmem %s0, %s313
        %s315 = sadd.s32 %s28, %s29
        %s316 = sadd.s32 %s27, %s28
        %p318 = scmp.eq.s32.totalorder %s29, 0
        // Predicated region
        $region53: #{tpu_custom_call.1} parent=43 // pred_check
          %p319 = pneg %p318
        $region54: #{tpu_custom_call.1} parent=43 // pred_check_branch
          %321 = sbr.rel (%p319) target = $region56
        $region55: #{tpu_custom_call.1} parent=43 // pred_region
          %322 = vst [vmem:[%s306] sm:$0xff] -inf
          %323 = vst [vmem:[%s306 + $0x8] sm:$0xff] -inf
          %324 = vst [vmem:[%s306 + $0x10] sm:$0xff] -inf
          %325 = vst [vmem:[%s306 + $0x18] sm:$0xff] -inf
          %326 = vst [vmem:[%s306 + $0x20] sm:$0xff] -inf
          %327 = vst [vmem:[%s306 + $0x28] sm:$0xff] -inf
          %328 = vst [vmem:[%s306 + $0x30] sm:$0xff] -inf
          %329 = vst [vmem:[%s306 + $0x38] sm:$0xff] -inf
          %330 = vst [vmem:[%s306 + $0x40] sm:$0xff] -inf
          %331 = vst [vmem:[%s306 + $0x48] sm:$0xff] -inf
          %332 = vst [vmem:[%s306 + $0x50] sm:$0xff] -inf
          %333 = vst [vmem:[%s306 + $0x58] sm:$0xff] -inf
          %334 = vst [vmem:[%s306 + $0x60] sm:$0xff] -inf
          %335 = vst [vmem:[%s306 + $0x68] sm:$0xff] -inf
          %336 = vst [vmem:[%s306 + $0x70] sm:$0xff] -inf
          %337 = vst [vmem:[%s306 + $0x78] sm:$0xff] -inf
        $region56: #{tpu_custom_call.1} parent=43 // pred_fallthru
          _
        %v338 = vld [vmem:[%s1] sm:$0xff]
        %v339 = vld [vmem:[%s1 + $0x8] sm:$0xff]
        %v340 = vld [vmem:[%s1 + $0x10] sm:$0xff]
        %v341 = vld [vmem:[%s1 + $0x18] sm:$0xff]
        %v342 = vld [vmem:[%s1 + $0x20] sm:$0xff]
        %v343 = vld [vmem:[%s1 + $0x28] sm:$0xff]
        %v344 = vld [vmem:[%s1 + $0x30] sm:$0xff]
        %v345 = vld [vmem:[%s1 + $0x38] sm:$0xff]
        %v346 = vld [vmem:[#allocation2] sm:$0xff]
        %v347 = vld [vmem:[#allocation2 + $0x8] sm:$0xff]
        %v348 = vld [vmem:[#allocation2 + $0x10] sm:$0xff]
        %v349 = vld [vmem:[#allocation2 + $0x18] sm:$0xff]
        %v350 = vld [vmem:[#allocation2 + $0x20] sm:$0xff]
        %v351 = vld [vmem:[#allocation2 + $0x28] sm:$0xff]
        %v352 = vld [vmem:[#allocation2 + $0x30] sm:$0xff]
        %v353 = vld [vmem:[#allocation2 + $0x38] sm:$0xff]
        %v354 = vld [vmem:[%s3] sm:$0xf]
        %v355 = vld [vmem:[%s3 + $0x4] sm:$0xf]
        %v356 = vld [vmem:[%s3 + $0x8] sm:$0xf]
        %v357 = vld [vmem:[%s3 + $0xc] sm:$0xf]
        %v358 = vld [vmem:[%s3 + $0x10] sm:$0xf]
        %v359 = vld [vmem:[%s3 + $0x14] sm:$0xf]
        %v360 = vld [vmem:[%s3 + $0x18] sm:$0xf]
        %v361 = vld [vmem:[%s3 + $0x1c] sm:$0xf]
        %v362 = vld [vmem:[%s3 + $0x20] sm:$0xf]
        %v363 = vld [vmem:[%s3 + $0x24] sm:$0xf]
        %v364 = vld [vmem:[%s3 + $0x28] sm:$0xf]
        %v365 = vld [vmem:[%s3 + $0x2c] sm:$0xf]
        %v366 = vld [vmem:[%s3 + $0x30] sm:$0xf]
        %v367 = vld [vmem:[%s3 + $0x34] sm:$0xf]
        %v368 = vld [vmem:[%s3 + $0x38] sm:$0xf]
        %v369 = vld [vmem:[%s3 + $0x3c] sm:$0xf]
        %v370 = vld [vmem:[%s4] sm:$0xff]
        %v371 = vld [vmem:[%s4 + $0x8] sm:$0xff]
        %v372 = vld [vmem:[%s4 + $0x10] sm:$0xff]
        %v373 = vld [vmem:[%s4 + $0x18] sm:$0xff]
        %v374 = vld [vmem:[%s4 + $0x20] sm:$0xff]
        %v375 = vld [vmem:[%s4 + $0x28] sm:$0xff]
        %v376 = vld [vmem:[%s4 + $0x30] sm:$0xff]
        %v377 = vld [vmem:[%s4 + $0x38] sm:$0xff]
        %v378 = vld [vmem:[%s4 + $0x40] sm:$0xff]
        %v379 = vld [vmem:[%s4 + $0x48] sm:$0xff]
        %v380 = vld [vmem:[%s4 + $0x50] sm:$0xff]
        %v381 = vld [vmem:[%s4 + $0x58] sm:$0xff]
        %v382 = vld [vmem:[%s4 + $0x60] sm:$0xff]
        %v383 = vld [vmem:[%s4 + $0x68] sm:$0xff]
        %v384 = vld [vmem:[%s4 + $0x70] sm:$0xff]
        %v385 = vld [vmem:[%s4 + $0x78] sm:$0xff]
        %v386 = vld [vmem:[#allocation5] sm:$0xf]
        %v387 = vld [vmem:[#allocation5 + $0x4] sm:$0xf]
        %v388 = vld [vmem:[#allocation5 + $0x8] sm:$0xf]
        %v389 = vld [vmem:[#allocation5 + $0xc] sm:$0xf]
        %v390 = vld [vmem:[#allocation5 + $0x10] sm:$0xf]
        %v391 = vld [vmem:[#allocation5 + $0x14] sm:$0xf]
        %v392 = vld [vmem:[#allocation5 + $0x18] sm:$0xf]
        %v393 = vld [vmem:[#allocation5 + $0x1c] sm:$0xf]
        %v394 = vld [vmem:[#allocation5 + $0x20] sm:$0xf]
        %v395 = vld [vmem:[#allocation5 + $0x24] sm:$0xf]
        %v396 = vld [vmem:[#allocation5 + $0x28] sm:$0xf]
        %v397 = vld [vmem:[#allocation5 + $0x2c] sm:$0xf]
        %v398 = vld [vmem:[#allocation5 + $0x30] sm:$0xf]
        %v399 = vld [vmem:[#allocation5 + $0x34] sm:$0xf]
        %v400 = vld [vmem:[#allocation5 + $0x38] sm:$0xf]
        %v401 = vld [vmem:[#allocation5 + $0x3c] sm:$0xf]
        %v402 = vld [vmem:[%s306] sm:$0xff]
        %v403 = vld [vmem:[%s306 + $0x8] sm:$0xff]
        %v404 = vld [vmem:[%s306 + $0x10] sm:$0xff]
        %v405 = vld [vmem:[%s306 + $0x18] sm:$0xff]
        %v406 = vld [vmem:[%s306 + $0x20] sm:$0xff]
        %v407 = vld [vmem:[%s306 + $0x28] sm:$0xff]
        %v408 = vld [vmem:[%s306 + $0x30] sm:$0xff]
        %v409 = vld [vmem:[%s306 + $0x38] sm:$0xff]
        %v410 = vld [vmem:[%s306 + $0x40] sm:$0xff]
        %v411 = vld [vmem:[%s306 + $0x48] sm:$0xff]
        %v412 = vld [vmem:[%s306 + $0x50] sm:$0xff]
        %v413 = vld [vmem:[%s306 + $0x58] sm:$0xff]
        %v414 = vld [vmem:[%s306 + $0x60] sm:$0xff]
        %v415 = vld [vmem:[%s306 + $0x68] sm:$0xff]
        %v416 = vld [vmem:[%s306 + $0x70] sm:$0xff]
        %v417 = vld [vmem:[%s306 + $0x78] sm:$0xff]
        %v418 = vld [vmem:[%s314] sm:$0xff]
        %vm419 = vcmask 64512
        %v421 = vsel %vm419, %v338, 0
        %v424 = vsel %vm419, %v339, 0
        %v427 = vsel %vm419, %v340, 0
        %v430 = vsel %vm419, %v341, 0
        %v433 = vsel %vm419, %v342, 0
        %v436 = vsel %vm419, %v343, 0
        %v439 = vsel %vm419, %v344, 0
        %v442 = vsel %vm419, %v345, 0
        %444 = vmatprep.subr.mxu0 0.0
        %445 = vmatpush1.msra.mxu0 0.0
        %446 = vmatprep.subr.mxu0 0.0
        %447 = vmatpush1.msra.mxu0 0.0
        %448 = vmatprep.subr.mxu0 0.0
        %449 = vmatpush1.msra.mxu0 0.0
        %450 = vmatprep.subr.mxu0 0.0
        %451 = vmatpush1.msra.mxu0 0.0
        %452 = vmatprep.subr.mxu0 0.0
        %453 = vmatpush1.msra.mxu0 0.0
        %454 = vmatprep.subr.mxu0 0.0
        %455 = vmatpush1.msra.mxu0 0.0
        %456 = vmatprep.subr.mxu0 0.0
        %457 = vmatpush1.msra.mxu0 0.0
        %458 = vmatprep.subr.mxu0 0.0
        %459 = vmatpush1.msra.mxu0 0.0
        %460 = vmatprep.subr.mxu0 0.0
        %461 = vmatpush1.msra.mxu0 0.0
        %462 = vmatprep.subr.mxu0 0.0
        %463 = vmatpush1.msra.mxu0 0.0
        %464 = vmatprep.subr.mxu0 0.0
        %465 = vmatpush1.msra.mxu0 0.0
        %466 = vmatprep.subr.mxu0 0.0
        %467 = vmatpush1.msra.mxu0 0.0
        %468 = vmatprep.subr.mxu0 0.0
        %469 = vmatpush1.msra.mxu0 0.0
        %470 = vmatprep.subr.mxu0 0.0
        %471 = vmatpush1.msra.mxu0 0.0
        %472 = vmatprep.subr.mxu0 0.0
        %473 = vmatpush1.msra.mxu0 0.0
        %474 = vmatprep.subr.mxu0 0.0
        %475 = vmatpush1.msra.mxu0 %v418
        %476 = vmatprep.subr.mxu0 0.0
        %477 = vmatpush2.msra.mxu0 0.0
        %478 = vmatprep.subr.mxu0 0.0
        %479 = vmatpush2.msra.mxu0 0.0
        %480 = vmatprep.subr.mxu0 0.0
        %481 = vmatpush2.msra.mxu0 0.0
        %482 = vmatprep.subr.mxu0 0.0
        %483 = vmatpush2.msra.mxu0 0.0
        %484 = vmatprep.subr.mxu0 0.0
        %485 = vmatpush2.msra.mxu0 0.0
        %486 = vmatprep.subr.mxu0 0.0
        %487 = vmatpush2.msra.mxu0 0.0
        %488 = vmatprep.subr.mxu0 0.0
        %489 = vmatpush2.msra.mxu0 0.0
        %490 = vmatprep.subr.mxu0 0.0
        %491 = vmatpush2.msra.mxu0 0.0
        %492 = vmatprep.subr.mxu0 0.0
        %493 = vmatpush2.msra.mxu0 0.0
        %494 = vmatprep.subr.mxu0 0.0
        %495 = vmatpush2.msra.mxu0 0.0
        %496 = vmatprep.subr.mxu0 0.0
        %497 = vmatpush2.msra.mxu0 0.0
        %498 = vmatprep.subr.mxu0 0.0
        %499 = vmatpush2.msra.mxu0 0.0
        %500 = vmatprep.subr.mxu0 0.0
        %501 = vmatpush2.msra.mxu0 0.0
        %502 = vmatprep.subr.mxu0 0.0
        %503 = vmatpush2.msra.mxu0 0.0
        %504 = vmatprep.subr.mxu0 0.0
        %505 = vmatpush2.msra.mxu0 0.0
        %506 = vmatprep.subr.mxu0 0.0
        %507 = vmatpush2.msra.mxu0 0.0
        %508 = vmatprep.mubr.f32.mxu0 0.0
        %509 = vmatmul.mubr.f32.gmra.mxu0 %v421
        %v510 = vpop.f32.mrf.mxu0
        %v511 = vadd.f32 %v346, %v510
        %v512 = vpop.f32.mrf.mxu0
        %513 = vmatprep.mubr.f32.mxu0 0.0
        %514 = vmatmul.mubr.f32.gmra.mxu0 %v424
        %v515 = vpop.f32.mrf.mxu0
        %v516 = vadd.f32 %v347, %v515
        %v517 = vpop.f32.mrf.mxu0
        %518 = vmatprep.mubr.f32.mxu0 0.0
        %519 = vmatmul.mubr.f32.gmra.mxu0 %v427
        %v520 = vpop.f32.mrf.mxu0
        %v521 = vadd.f32 %v348, %v520
        %v522 = vpop.f32.mrf.mxu0
        %523 = vmatprep.mubr.f32.mxu0 0.0
        %524 = vmatmul.mubr.f32.gmra.mxu0 %v430
        %v525 = vpop.f32.mrf.mxu0
        %v526 = vadd.f32 %v349, %v525
        %v527 = vpop.f32.mrf.mxu0
        %528 = vmatprep.mubr.f32.mxu0 0.0
        %529 = vmatmul.mubr.f32.gmra.mxu0 %v433
        %v530 = vpop.f32.mrf.mxu0
        %v531 = vadd.f32 %v350, %v530
        %v532 = vpop.f32.mrf.mxu0
        %533 = vmatprep.mubr.f32.mxu0 0.0
        %534 = vmatmul.mubr.f32.gmra.mxu0 %v436
        %v535 = vpop.f32.mrf.mxu0
        %v536 = vadd.f32 %v351, %v535
        %v537 = vpop.f32.mrf.mxu0
        %538 = vmatprep.mubr.f32.mxu0 0.0
        %539 = vmatmul.mubr.f32.gmra.mxu0 %v439
        %v540 = vpop.f32.mrf.mxu0
        %v541 = vadd.f32 %v352, %v540
        %v542 = vpop.f32.mrf.mxu0
        %543 = vmatprep.mubr.f32.mxu0 0.0
        %544 = vmatmul.mubr.f32.gmra.mxu0 %v442
        %v545 = vpop.f32.mrf.mxu0
        %v546 = vadd.f32 %v353, %v545
        %v547 = vpop.f32.mrf.mxu0
        %548 = vdwg.mxu0
        %v549 = vmax.f32 %v511, 0.0
        %v550 = vmax.f32 %v516, 0.0
        %v551 = vmax.f32 %v521, 0.0
        %v552 = vmax.f32 %v526, 0.0
        %v553 = vmax.f32 %v531, 0.0
        %v554 = vmax.f32 %v536, 0.0
        %v555 = vmax.f32 %v541, 0.0
        %v556 = vmax.f32 %v546, 0.0
        %v557 = vpack.c.bf16 %v550, %v549
        %v558 = vpack.c.bf16 %v552, %v551
        %v559 = vpack.c.bf16 %v554, %v553
        %v560 = vpack.c.bf16 %v556, %v555
        %v577 = vunpack.c.l.b16 %v354
        %v578 = vunpack.c.l.b16 %v355
        %v579 = vunpack.c.l.b16 %v356
        %v580 = vunpack.c.l.b16 %v357
        %v581 = vunpack.c.l.b16 %v358
        %v582 = vunpack.c.l.b16 %v359
        %v583 = vunpack.c.l.b16 %v360
        %v584 = vunpack.c.l.b16 %v361
        %v585 = vunpack.c.l.b16 %v362
        %v586 = vunpack.c.l.b16 %v363
        %v587 = vunpack.c.l.b16 %v364
        %v588 = vunpack.c.l.b16 %v365
        %v589 = vunpack.c.l.b16 %v366
        %v590 = vunpack.c.l.b16 %v367
        %v591 = vunpack.c.l.b16 %v368
        %v592 = vunpack.c.l.b16 %v369
        %v593 = vpack.c.b16 %v578, %v577
        %v594 = vpack.c.b16 %v580, %v579
        %v595 = vpack.c.b16 %v582, %v581
        %v596 = vpack.c.b16 %v584, %v583
        %v597 = vpack.c.b16 %v586, %v585
        %v598 = vpack.c.b16 %v588, %v587
        %v599 = vpack.c.b16 %v590, %v589
        %v600 = vpack.c.b16 %v592, %v591
        %vm601 = vcmask 523264
        %v603 = vsel %vm601, %v593, 0
        %v606 = vsel %vm601, %v594, 0
        %v609 = vsel %vm601, %v595, 0
        %v612 = vsel %vm601, %v596, 0
        %v615 = vsel %vm601, %v597, 0
        %v618 = vsel %vm601, %v598, 0
        %v621 = vsel %vm601, %v599, 0
        %v624 = vsel %vm601, %v600, 0
        %626 = vmatprep.subr.bf16.mxu0 0
        %627 = vmatpush1.bf16.msra.mxu0 0
        %628 = vmatprep.subr.bf16.mxu0 0
        %629 = vmatpush1.bf16.msra.mxu0 0
        %630 = vmatprep.subr.bf16.mxu0 0
        %631 = vmatpush1.bf16.msra.mxu0 0
        %632 = vmatprep.subr.bf16.mxu0 0
        %633 = vmatpush1.bf16.msra.mxu0 0
        %634 = vmatprep.subr.bf16.mxu0 0
        %635 = vmatpush1.bf16.msra.mxu0 %v560
        %636 = vmatprep.subr.bf16.mxu0 0
        %637 = vmatpush1.bf16.msra.mxu0 %v559
        %638 = vmatprep.subr.bf16.mxu0 0
        %639 = vmatpush1.bf16.msra.mxu0 %v558
        %640 = vmatprep.subr.bf16.mxu0 0
        %641 = vmatpush1.bf16.msra.mxu0 %v557
        %642 = vmatprep.subr.bf16.mxu0 0
        %643 = vmatpush2.bf16.msra.mxu0 0
        %644 = vmatprep.subr.bf16.mxu0 0
        %645 = vmatpush2.bf16.msra.mxu0 0
        %646 = vmatprep.subr.bf16.mxu0 0
        %647 = vmatpush2.bf16.msra.mxu0 0
        %648 = vmatprep.subr.bf16.mxu0 0
        %649 = vmatpush2.bf16.msra.mxu0 0
        %650 = vmatprep.subr.bf16.mxu0 0
        %651 = vmatpush2.bf16.msra.mxu0 0
        %652 = vmatprep.subr.bf16.mxu0 0
        %653 = vmatpush2.bf16.msra.mxu0 0
        %654 = vmatprep.subr.bf16.mxu0 0
        %655 = vmatpush2.bf16.msra.mxu0 0
        %656 = vmatprep.subr.bf16.mxu0 0
        %657 = vmatpush2.bf16.msra.mxu0 0
        %658 = vmatprep.mubr.bf16.mxu0 0
        %659 = vmatmul.mubr.bf16.gmra.mxu0 %v603
        %v660 = vpop.f32.mrf.mxu0
        %v661 = vadd.f32 %v370, %v660
        %v662 = vpop.f32.mrf.mxu0
        %v663 = vpop.f32.mrf.mxu0
        %v664 = vadd.f32 %v371, %v663
        %v665 = vpop.f32.mrf.mxu0
        %666 = vmatprep.mubr.bf16.mxu0 0
        %667 = vmatmul.mubr.bf16.gmra.mxu0 %v606
        %v668 = vpop.f32.mrf.mxu0
        %v669 = vadd.f32 %v372, %v668
        %v670 = vpop.f32.mrf.mxu0
        %v671 = vpop.f32.mrf.mxu0
        %v672 = vadd.f32 %v373, %v671
        %v673 = vpop.f32.mrf.mxu0
        %674 = vmatprep.mubr.bf16.mxu0 0
        %675 = vmatmul.mubr.bf16.gmra.mxu0 %v609
        %v676 = vpop.f32.mrf.mxu0
        %v677 = vadd.f32 %v374, %v676
        %v678 = vpop.f32.mrf.mxu0
        %v679 = vpop.f32.mrf.mxu0
        %v680 = vadd.f32 %v375, %v679
        %v681 = vpop.f32.mrf.mxu0
        %682 = vmatprep.mubr.bf16.mxu0 0
        %683 = vmatmul.mubr.bf16.gmra.mxu0 %v612
        %v684 = vpop.f32.mrf.mxu0
        %v685 = vadd.f32 %v376, %v684
        %v686 = vpop.f32.mrf.mxu0
        %v687 = vpop.f32.mrf.mxu0
        %v688 = vadd.f32 %v377, %v687
        %v689 = vpop.f32.mrf.mxu0
        %690 = vmatprep.mubr.bf16.mxu0 0
        %691 = vmatmul.mubr.bf16.gmra.mxu0 %v615
        %v692 = vpop.f32.mrf.mxu0
        %v693 = vadd.f32 %v378, %v692
        %v694 = vpop.f32.mrf.mxu0
        %v695 = vpop.f32.mrf.mxu0
        %v696 = vadd.f32 %v379, %v695
        %v697 = vpop.f32.mrf.mxu0
        %698 = vmatprep.mubr.bf16.mxu0 0
        %699 = vmatmul.mubr.bf16.gmra.mxu0 %v618
        %v700 = vpop.f32.mrf.mxu0
        %v701 = vadd.f32 %v380, %v700
        %v702 = vpop.f32.mrf.mxu0
        %v703 = vpop.f32.mrf.mxu0
        %v704 = vadd.f32 %v381, %v703
        %v705 = vpop.f32.mrf.mxu0
        %706 = vmatprep.mubr.bf16.mxu0 0
        %707 = vmatmul.mubr.bf16.gmra.mxu0 %v621
        %v708 = vpop.f32.mrf.mxu0
        %v709 = vadd.f32 %v382, %v708
        %v710 = vpop.f32.mrf.mxu0
        %v711 = vpop.f32.mrf.mxu0
        %v712 = vadd.f32 %v383, %v711
        %v713 = vpop.f32.mrf.mxu0
        %714 = vmatprep.mubr.bf16.mxu0 0
        %715 = vmatmul.mubr.bf16.gmra.mxu0 %v624
        %v716 = vpop.f32.mrf.mxu0
        %v717 = vadd.f32 %v384, %v716
        %v718 = vpop.f32.mrf.mxu0
        %v719 = vpop.f32.mrf.mxu0
        %v720 = vadd.f32 %v385, %v719
        %v721 = vpop.f32.mrf.mxu0
        %722 = vdwg.mxu0
        %v723 = vmax.f32 %v661, 0.0
        %v724 = vmax.f32 %v664, 0.0
        %v725 = vmax.f32 %v669, 0.0
        %v726 = vmax.f32 %v672, 0.0
        %v727 = vmax.f32 %v677, 0.0
        %v728 = vmax.f32 %v680, 0.0
        %v729 = vmax.f32 %v685, 0.0
        %v730 = vmax.f32 %v688, 0.0
        %v731 = vmax.f32 %v693, 0.0
        %v732 = vmax.f32 %v696, 0.0
        %v733 = vmax.f32 %v701, 0.0
        %v734 = vmax.f32 %v704, 0.0
        %v735 = vmax.f32 %v709, 0.0
        %v736 = vmax.f32 %v712, 0.0
        %v737 = vmax.f32 %v717, 0.0
        %v738 = vmax.f32 %v720, 0.0
        %v739 = vpack.c.bf16 %v724, %v723
        %v740 = vpack.c.bf16 %v726, %v725
        %v741 = vpack.c.bf16 %v728, %v727
        %v742 = vpack.c.bf16 %v730, %v729
        %v743 = vpack.c.bf16 %v732, %v731
        %v744 = vpack.c.bf16 %v734, %v733
        %v745 = vpack.c.bf16 %v736, %v735
        %v746 = vpack.c.bf16 %v738, %v737
        %v763 = vunpack.c.l.b16 %v386
        %v764 = vunpack.c.l.b16 %v387
        %v765 = vunpack.c.l.b16 %v388
        %v766 = vunpack.c.l.b16 %v389
        %v767 = vunpack.c.l.b16 %v390
        %v768 = vunpack.c.l.b16 %v391
        %v769 = vunpack.c.l.b16 %v392
        %v770 = vunpack.c.l.b16 %v393
        %v771 = vunpack.c.l.b16 %v394
        %v772 = vunpack.c.l.b16 %v395
        %v773 = vunpack.c.l.b16 %v396
        %v774 = vunpack.c.l.b16 %v397
        %v775 = vunpack.c.l.b16 %v398
        %v776 = vunpack.c.l.b16 %v399
        %v777 = vunpack.c.l.b16 %v400
        %v778 = vunpack.c.l.b16 %v401
        %v779 = vpack.c.b16 %v764, %v763
        %v780 = vpack.c.b16 %v766, %v765
        %v781 = vpack.c.b16 %v768, %v767
        %v782 = vpack.c.b16 %v770, %v769
        %v783 = vpack.c.b16 %v772, %v771
        %v784 = vpack.c.b16 %v774, %v773
        %v785 = vpack.c.b16 %v776, %v775
        %v786 = vpack.c.b16 %v778, %v777
        %795 = vmatprep.subr.bf16.mxu0 0
        %796 = vmatpush1.bf16.msra.mxu0 %v746
        %797 = vmatprep.subr.bf16.mxu0 0
        %798 = vmatpush1.bf16.msra.mxu0 %v745
        %799 = vmatprep.subr.bf16.mxu0 0
        %800 = vmatpush1.bf16.msra.mxu0 %v744
        %801 = vmatprep.subr.bf16.mxu0 0
        %802 = vmatpush1.bf16.msra.mxu0 %v743
        %803 = vmatprep.subr.bf16.mxu0 0
        %804 = vmatpush1.bf16.msra.mxu0 %v742
        %805 = vmatprep.subr.bf16.mxu0 0
        %806 = vmatpush1.bf16.msra.mxu0 %v741
        %807 = vmatprep.subr.bf16.mxu0 0
        %808 = vmatpush1.bf16.msra.mxu0 %v740
        %809 = vmatprep.subr.bf16.mxu0 0
        %810 = vmatpush1.bf16.msra.mxu0 %v739
        %811 = vmatprep.subr.bf16.mxu0 0
        %812 = vmatpush2.bf16.msra.mxu0 0
        %813 = vmatprep.subr.bf16.mxu0 0
        %814 = vmatpush2.bf16.msra.mxu0 0
        %815 = vmatprep.subr.bf16.mxu0 0
        %816 = vmatpush2.bf16.msra.mxu0 0
        %817 = vmatprep.subr.bf16.mxu0 0
        %818 = vmatpush2.bf16.msra.mxu0 0
        %819 = vmatprep.subr.bf16.mxu0 0
        %820 = vmatpush2.bf16.msra.mxu0 0
        %821 = vmatprep.subr.bf16.mxu0 0
        %822 = vmatpush2.bf16.msra.mxu0 0
        %823 = vmatprep.subr.bf16.mxu0 0
        %824 = vmatpush2.bf16.msra.mxu0 0
        %825 = vmatprep.subr.bf16.mxu0 0
        %826 = vmatpush2.bf16.msra.mxu0 0
        %827 = vmatprep.mubr.bf16.mxu0 0
        %828 = vmatmul.mubr.bf16.gmra.mxu0 %v779
        %v829 = vpop.f32.mrf.mxu0
        %v830 = vadd.f32 0.0, %v829
        %v831 = vpop.f32.mrf.mxu0
        %v832 = vpop.f32.mrf.mxu0
        %v833 = vadd.f32 0.0, %v832
        %v834 = vpop.f32.mrf.mxu0
        %835 = vmatprep.mubr.bf16.mxu0 0
        %836 = vmatmul.mubr.bf16.gmra.mxu0 %v780
        %v837 = vpop.f32.mrf.mxu0
        %v838 = vadd.f32 0.0, %v837
        %v839 = vpop.f32.mrf.mxu0
        %v840 = vpop.f32.mrf.mxu0
        %v841 = vadd.f32 0.0, %v840
        %v842 = vpop.f32.mrf.mxu0
        %843 = vmatprep.mubr.bf16.mxu0 0
        %844 = vmatmul.mubr.bf16.gmra.mxu0 %v781
        %v845 = vpop.f32.mrf.mxu0
        %v846 = vadd.f32 0.0, %v845
        %v847 = vpop.f32.mrf.mxu0
        %v848 = vpop.f32.mrf.mxu0
        %v849 = vadd.f32 0.0, %v848
        %v850 = vpop.f32.mrf.mxu0
        %851 = vmatprep.mubr.bf16.mxu0 0
        %852 = vmatmul.mubr.bf16.gmra.mxu0 %v782
        %v853 = vpop.f32.mrf.mxu0
        %v854 = vadd.f32 0.0, %v853
        %v855 = vpop.f32.mrf.mxu0
        %v856 = vpop.f32.mrf.mxu0
        %v857 = vadd.f32 0.0, %v856
        %v858 = vpop.f32.mrf.mxu0
        %859 = vmatprep.mubr.bf16.mxu0 0
        %860 = vmatmul.mubr.bf16.gmra.mxu0 %v783
        %v861 = vpop.f32.mrf.mxu0
        %v862 = vadd.f32 0.0, %v861
        %v863 = vpop.f32.mrf.mxu0
        %v864 = vpop.f32.mrf.mxu0
        %v865 = vadd.f32 0.0, %v864
        %v866 = vpop.f32.mrf.mxu0
        %867 = vmatprep.mubr.bf16.mxu0 0
        %868 = vmatmul.mubr.bf16.gmra.mxu0 %v784
        %v869 = vpop.f32.mrf.mxu0
        %v870 = vadd.f32 0.0, %v869
        %v871 = vpop.f32.mrf.mxu0
        %v872 = vpop.f32.mrf.mxu0
        %v873 = vadd.f32 0.0, %v872
        %v874 = vpop.f32.mrf.mxu0
        %875 = vmatprep.mubr.bf16.mxu0 0
        %876 = vmatmul.mubr.bf16.gmra.mxu0 %v785
        %v877 = vpop.f32.mrf.mxu0
        %v878 = vadd.f32 0.0, %v877
        %v879 = vpop.f32.mrf.mxu0
        %v880 = vpop.f32.mrf.mxu0
        %v881 = vadd.f32 0.0, %v880
        %v882 = vpop.f32.mrf.mxu0
        %883 = vmatprep.mubr.bf16.mxu0 0
        %884 = vmatmul.mubr.bf16.gmra.mxu0 %v786
        %v885 = vpop.f32.mrf.mxu0
        %v886 = vadd.f32 0.0, %v885
        %v887 = vpop.f32.mrf.mxu0
        %v888 = vpop.f32.mrf.mxu0
        %v889 = vadd.f32 0.0, %v888
        %v890 = vpop.f32.mrf.mxu0
        %891 = vdwg.mxu0
        %v892 = vmax.f32 %v402, %v830
        %v893 = vmax.f32 %v403, %v833
        %v894 = vmax.f32 %v404, %v838
        %v895 = vmax.f32 %v405, %v841
        %v896 = vmax.f32 %v406, %v846
        %v897 = vmax.f32 %v407, %v849
        %v898 = vmax.f32 %v408, %v854
        %v899 = vmax.f32 %v409, %v857
        %v900 = vmax.f32 %v410, %v862
        %v901 = vmax.f32 %v411, %v865
        %v902 = vmax.f32 %v412, %v870
        %v903 = vmax.f32 %v413, %v873
        %v904 = vmax.f32 %v414, %v878
        %v905 = vmax.f32 %v415, %v881
        %v906 = vmax.f32 %v416, %v886
        %v907 = vmax.f32 %v417, %v889
        %908 = vst [vmem:[%s306] sm:$0xff] %v892
        %909 = vst [vmem:[%s306 + $0x8] sm:$0xff] %v893
        %910 = vst [vmem:[%s306 + $0x10] sm:$0xff] %v894
        %911 = vst [vmem:[%s306 + $0x18] sm:$0xff] %v895
        %912 = vst [vmem:[%s306 + $0x20] sm:$0xff] %v896
        %913 = vst [vmem:[%s306 + $0x28] sm:$0xff] %v897
        %914 = vst [vmem:[%s306 + $0x30] sm:$0xff] %v898
        %915 = vst [vmem:[%s306 + $0x38] sm:$0xff] %v899
        %916 = vst [vmem:[%s306 + $0x40] sm:$0xff] %v900
        %917 = vst [vmem:[%s306 + $0x48] sm:$0xff] %v901
        %918 = vst [vmem:[%s306 + $0x50] sm:$0xff] %v902
        %919 = vst [vmem:[%s306 + $0x58] sm:$0xff] %v903
        %920 = vst [vmem:[%s306 + $0x60] sm:$0xff] %v904
        %921 = vst [vmem:[%s306 + $0x68] sm:$0xff] %v905
        %922 = vst [vmem:[%s306 + $0x70] sm:$0xff] %v906
        %923 = vst [vmem:[%s306 + $0x78] sm:$0xff] %v907
        %s924 = sand.u32 %s186, 1
        %s925 = scalar_lea.sflag [#allocation4], %s924
        %s926 = sand.u32 %s186, 1
        %s927 = smul.addr %s926, 128
        %s928 = scalar_lea.vmem [#allocation7], %s927
        // Predicated region
        $region57: #{tpu_custom_call.1} parent=43 // pred_check
          %p929 = pneg %p196
        $region58: #{tpu_custom_call.1} parent=43 // pred_check_branch
          %931 = sbr.rel (%p929) target = $region60
        $region59: #{tpu_custom_call.1} parent=43 // pred_region
          %s932 = sadd.s32 %s27, %s28
          %s934 = ssub.s32 2048, 2048
          %935 = vsyncadd %s925, %s934
          %s936 = smul.addr %s932, 16
          %s937 = smul.addr %s936, 128
          %s938 = scalar_lea.hbm %s6, %s937
          %s939 = sshll.u32 %s928, 4
          %s940 = int_to_ptr.vmem [resolvable:$true] %s939
          %945 = dma.vmem_to_hbm [thread:$0]  %s940, 2048, %s938, %s925, 128, 128, 8
        $region60: #{tpu_custom_call.1} parent=43 // pred_fallthru
          _
      $region44: #{tpu_custom_call.1} parent=5 // pred_fallthru
        _
      %p946 = scmp.le.s32.totalorder 2, %s17
      // Predicated region
      $region61: #{tpu_custom_call.1} parent=5 // pred_check
        %p947 = pneg %p946
      $region62: #{tpu_custom_call.1} parent=5 // pred_check_branch
        %949 = sbr.rel (%p947) target = $region64
      $region63: #{tpu_custom_call.1} parent=5 // pred_region
        %s950 = ssub.s32 %s17, 2
        // Predicated region
        $region65: #{tpu_custom_call.1} parent=63 // pred_check
          %p951 = pneg %p202
        $region66: #{tpu_custom_call.1} parent=63 // pred_check_branch
          %953 = sbr.rel (%p951) target = $region68
        $region67: #{tpu_custom_call.1} parent=63 // pred_region
          %s954 = sand.u32 %s187, 1
          %s955 = scalar_lea.sflag [#allocation4], %s954
          %s956 = sand.u32 %s187, 1
          %s957 = smul.addr %s956, 128
          %s958 = scalar_lea.vmem [#allocation7], %s957
          %959 = dma.done %s955, 2048
        $region68: #{tpu_custom_call.1} parent=63 // pred_fallthru
          _
      $region64: #{tpu_custom_call.1} parent=5 // pred_fallthru
        _
    $region6: #{tpu_custom_call.1} parent=1 // loop_footer
      %s21 = sadd.s32 1, %s17
    $region7: #{tpu_custom_call.1} parent=1 // loop_footer_branch
      %16 = sbr.rel target = $region3
    $region8: #{tpu_custom_call.1} parent=1 // loop_exit
      _
    %960 = vsyncpa [#allocation3], 1
    %s961 = scalar_lea.sflag [#allocation3], 1
    %962 = vsyncpa %s961, 1
    %963 = vsyncpa [#allocation6], 1
    %964 = vsyncpa [#allocation4], 1
    %s965 = scalar_lea.sflag [#allocation4], 1
    %966 = vsyncpa %s965, 1

</llo_original>
